<compile_context>
chip_gen: v7x
topology: tpu7x:2x2x1
jax: 0.10.0
libtpu: 0.0.40
codegen_flags: <defaults>
</compile_context>

<pallas_src>
import jax
import jax.numpy as jnp
import numpy as np
from jax.experimental import pallas as pl
from jax.experimental.pallas import tpu as pltpu

_LANE = 128
_TARGET_BLOCK_BYTES = 4 * 1024 * 1024  # real score bytes per grid step


# ----------------------------------------------------------------------------
# Fast path: C <= 128, classes packed along lanes (128/C rows per lane row).
# ----------------------------------------------------------------------------
def _make_packed_kernel(cp):
    """cp: number of classes, power of two, divides 128."""
    r = _LANE // cp                 # rows packed into one 128-lane row
    log2c = cp.bit_length() - 1

    def kernel(thr_ref, s_ref, o_ref):
        thr = thr_ref[0, 0]                                        # SMEM scalar
        s = s_ref[...]                                             # (g, 128) f32
        g = s.shape[0]
        lane = jax.lax.broadcasted_iota(jnp.int32, (g, _LANE), 1)

        # Segmented argmax over each cp-lane segment: windowed tree reduce of
        # (value, lane-index) pairs via lane rotations.  Strict '>' keeps the
        # lowest lane index on ties (first occurrence, like jnp/np.argmax).
        v, idx = s, lane
        probe = None
        for k in range(log2c):
            d = 1 << k
            ov = pltpu.roll(v, _LANE - d, axis=1)
            oi = pltpu.roll(idx, _LANE - d, axis=1)
            if probe is None:
                probe = oi          # rolled lane iota: reveals rotate direction
            take = ov > v
            v = jnp.where(take, ov, v)
            idx = jnp.where(take, oi, idx)

        # Threshold once on the reduced max; class id = winning lane mod cp.
        cid = jnp.where(v >= thr, jnp.bitwise_and(idx, cp - 1), 0)  # (g,128) i32

        if cp == 1:                 # degenerate single-class case
            o_ref[...] = cid
            return

        # Compact the one valid lane of each segment into a dense (g, r) tile
        # with a 0/1 selection matmul (MXU is idle here, values are small
        # ints so f32 accumulation is exact).  Depending on the hardware
        # rotate direction the valid lane is the segment start or end; pick
        # via the probe (lane 0's partner is lane 1 under np.roll semantics).
        cid_f = cid.astype(jnp.float32)
        li = jax.lax.broadcasted_iota(jnp.int32, (_LANE, r), 0)
        pi = jax.lax.broadcasted_iota(jnp.int32, (_LANE, r), 1)
        sel_lo = (li == pi * cp).astype(jnp.float32)                # segment starts
        sel_hi = (li == pi * cp + (cp - 1)).astype(jnp.float32)     # segment ends
        out_lo = jnp.dot(cid_f, sel_lo, preferred_element_type=jnp.float32)
        out_hi = jnp.dot(cid_f, sel_hi, preferred_element_type=jnp.float32)
        is_np_roll = probe[:, 0:1] == 1                             # (g, 1) bool
        o_ref[...] = jnp.where(is_np_roll, out_lo, out_hi).astype(jnp.int32)

    return kernel


def _argmax_packed(scores, thr, n, c, block_rows):
    # Pad classes up to a power of two (divides 128) with -inf columns.
    cp = 1 << max(0, (c - 1).bit_length())
    if cp != c:
        scores = jnp.pad(scores, ((0, 0), (0, cp - c)),
                         constant_values=-jnp.inf)
    r = _LANE // cp

    # Rows per grid step: multiple of 128, ~4 MiB of real score data.
    if block_rows is None:
        block_rows = (_TARGET_BLOCK_BYTES // (cp * 4)) // _LANE * _LANE
    block_rows = max(_LANE, (block_rows // _LANE) * _LANE)
    n_ceil = pl.cdiv(n, _LANE) * _LANE
    block_rows = min(block_rows, n_ceil)

    n_pad = pl.cdiv(n, block_rows) * block_rows
    if n_pad != n:
        scores = jnp.pad(scores, ((0, n_pad - n), (0, 0)))
    num_blocks = n_pad // block_rows
    g = block_rows // r                       # lane rows per grid step

    # Free, contiguous reshape: lane = (row % r) * cp + class.
    packed = scores.reshape(num_blocks, g, _LANE)

    out = pl.pallas_call(
        _make_packed_kernel(cp),
        out_shape=jax.ShapeDtypeStruct((num_blocks, g, r), jnp.int32),
        grid=(num_blocks,),
        in_specs=[pl.BlockSpec(memory_space=pltpu.MemorySpace.SMEM),
                  pl.BlockSpec((None, g, _LANE), lambda i: (i, 0, 0))],
        out_specs=pl.BlockSpec((None, g, r), lambda i: (i, 0, 0)),
        # "parallel" lets megacore shard the row grid across TensorCores.
        # TODO(synk): try pltpu.CORE_PARALLEL / core_map on v7x if an xprof
        # trace shows only one TC executing the grid.
        compiler_params=pltpu.CompilerParams(
            dimension_semantics=("parallel",),
            vmem_limit_bytes=32 * 1024 * 1024),
    )(thr, packed)

    return out.reshape(-1)[:n]


# ----------------------------------------------------------------------------
# Fallback: C > 128, classes stay on the lane axis (padding waste is small).
# ----------------------------------------------------------------------------
def _wide_kernel(thr_ref, s_ref, o_ref):
    thr = thr_ref[0, 0]
    s = s_ref[...]                                              # (g, 128, C)
    g, l, c = s.shape
    m = jnp.max(s, axis=-1, keepdims=True)                      # (g, 128, 1)
    col = jax.lax.broadcasted_iota(jnp.int32, (g, l, c), 2)
    ids = jnp.min(jnp.where(s == m, col, c), axis=-1)           # first argmax
    o_ref[...] = jnp.where(m[..., 0] >= thr, ids, 0).astype(jnp.int32)


def _argmax_wide(scores, thr, n, c, block_rows):
    c_lanes = pl.cdiv(c, _LANE) * _LANE
    if block_rows is None:
        block_rows = (_TARGET_BLOCK_BYTES // (c_lanes * 4)) // _LANE * _LANE
    block_rows = max(_LANE, (block_rows // _LANE) * _LANE)
    n_ceil = pl.cdiv(n, _LANE) * _LANE
    block_rows = min(block_rows, n_ceil)

    n_pad = pl.cdiv(n, block_rows) * block_rows
    if n_pad != n:
        scores = jnp.pad(scores, ((0, n_pad - n), (0, 0)))
    num_blocks = n_pad // block_rows
    g = block_rows // _LANE

    s4 = scores.reshape(num_blocks, g, _LANE, c)
    out = pl.pallas_call(
        _wide_kernel,
        out_shape=jax.ShapeDtypeStruct((num_blocks, g, _LANE), jnp.int32),
        grid=(num_blocks,),
        in_specs=[pl.BlockSpec(memory_space=pltpu.MemorySpace.SMEM),
                  pl.BlockSpec((None, g, _LANE, c), lambda i: (i, 0, 0, 0))],
        out_specs=pl.BlockSpec((None, g, _LANE), lambda i: (i, 0, 0)),
        compiler_params=pltpu.CompilerParams(
            dimension_semantics=("parallel",),
            vmem_limit_bytes=32 * 1024 * 1024),
    )(thr, s4)

    return out.reshape(-1)[:n]


# ----------------------------------------------------------------------------
# Public wrapper (== Model.forward).
# ----------------------------------------------------------------------------
def make_argmax(scores, score_threshold, block_rows=None):
    """scores: (N, C) float -> class_ids: (N,) int32."""
    scores = jnp.asarray(scores, dtype=jnp.float32)
    n, c = scores.shape
    # Threshold lives in SMEM so changing it does not trigger a recompile.
    thr = jnp.full((1, 1), score_threshold, dtype=jnp.float32)
    if c <= _LANE:
        return _argmax_packed(scores, thr, n, c, block_rows)
    return _argmax_wide(scores, thr, n, c, block_rows)


def _reference(scores, threshold):
    m = jnp.max(scores, axis=1)
    ids = jnp.argmax(scores, axis=1).astype(jnp.int32)
    return jnp.where(m < threshold, 0, ids)


if __name__ == "__main__":
    key = jax.random.PRNGKey(0)
    k1, k2, k3, k4 = jax.random.split(key, 4)

    # Typical point-history-classifier shape: small batch, 4 gesture classes.
    s1 = jax.random.uniform(k1, (8, 4), dtype=jnp.float32)
    o1 = jax.block_until_ready(make_argmax(s1, 0.9))
    np.testing.assert_array_equal(np.asarray(o1),
                                  np.asarray(_reference(s1, 0.9)))

    # Multi-block grid + tail padding (several grid steps, C = 16 packed x8).
    s2 = jax.random.uniform(k2, (1000, 16), dtype=jnp.float32)
    o2 = jax.block_until_ready(make_argmax(s2, 0.5, block_rows=256))
    np.testing.assert_array_equal(np.asarray(o2),
                                  np.asarray(_reference(s2, 0.5)))

    # Class count that is not a power of two (padded with -inf columns).
    s3 = jax.random.uniform(k3, (37, 6), dtype=jnp.float32)
    o3 = jax.block_until_ready(make_argmax(s3, 0.8))
    np.testing.assert_array_equal(np.asarray(o3),
                                  np.asarray(_reference(s3, 0.8)))

    # Wide-class fallback path (C > 128 keeps classes on the lane axis).
    s4 = jax.random.normal(k4, (64, 200), dtype=jnp.float32)
    o4 = jax.block_until_ready(make_argmax(s4, 0.0))
    np.testing.assert_array_equal(np.asarray(o4),
                                  np.asarray(_reference(s4, 0.0)))

    print("KERNEL_OK")
</pallas_src>

<mosaic_0001>
module attributes {stable_mosaic.version = 11 : i64} {
  func.func @kernel(%arg0: i32, %arg1: memref<1x1xf32, #tpu.memory_space<smem>>, %arg2: memref<1x4x128xf32, #tpu.memory_space<vmem>>, %arg3: memref<1x4x32xi32, #tpu.memory_space<vmem>>) attributes {dimension_semantics = [#tpu.dimension_semantics<parallel>], iteration_bounds = array<i64: 1>, scalar_prefetch = 0 : i64, scratch_operands = 0 : i64, tpu.core_type = #tpu.core_type<tc>, window_params = [{transform_indices = @transform_0, window_bounds = array<i64: 1, 1>}, {transform_indices = @transform_1, window_bounds = array<i64: 1, 4, 128>}, {transform_indices = @transform_2, window_bounds = array<i64: 1, 4, 32>}]} {
    %c0 = arith.constant 0 : index
    %c0_0 = arith.constant 0 : index
    %0 = memref.load %arg1[%c0, %c0_0] : memref<1x1xf32, #tpu.memory_space<smem>>
    %c0_1 = arith.constant 0 : index
    %c0_2 = arith.constant 0 : index
    %c0_3 = arith.constant 0 : index
    %1 = vector.load %arg2[%c0_1, %c0_2, %c0_3] : memref<1x4x128xf32, #tpu.memory_space<vmem>>, vector<1x4x128xf32>
    %2 = vector.shape_cast %1 : vector<1x4x128xf32> to vector<4x128xf32>
    %3 = tpu.iota {dimensions = array<i32: 1>} : vector<4x128xi32>
    %c127_i32 = arith.constant 127 : i32
    %4 = tpu.dynamic_rotate %2 by %c127_i32 dim 1 : vector<4x128xf32>, i32 -> vector<4x128xf32>
    %c127_i32_4 = arith.constant 127 : i32
    %5 = tpu.dynamic_rotate %3 by %c127_i32_4 dim 1 : vector<4x128xi32>, i32 -> vector<4x128xi32>
    %6 = arith.cmpf ogt, %4, %2 : vector<4x128xf32>
    %7 = arith.select %6, %4, %2 : vector<4x128xi1>, vector<4x128xf32>
    %8 = arith.select %6, %5, %3 : vector<4x128xi1>, vector<4x128xi32>
    %c126_i32 = arith.constant 126 : i32
    %9 = tpu.dynamic_rotate %7 by %c126_i32 dim 1 : vector<4x128xf32>, i32 -> vector<4x128xf32>
    %c126_i32_5 = arith.constant 126 : i32
    %10 = tpu.dynamic_rotate %8 by %c126_i32_5 dim 1 : vector<4x128xi32>, i32 -> vector<4x128xi32>
    %11 = arith.cmpf ogt, %9, %7 : vector<4x128xf32>
    %12 = arith.select %11, %9, %7 : vector<4x128xi1>, vector<4x128xf32>
    %13 = arith.select %11, %10, %8 : vector<4x128xi1>, vector<4x128xi32>
    %14 = vector.broadcast %0 : f32 to vector<4x128xf32>
    %15 = arith.cmpf oge, %12, %14 : vector<4x128xf32>
    %c3_i32 = arith.constant 3 : i32
    %16 = vector.broadcast %c3_i32 : i32 to vector<4x128xi32>
    %17 = arith.andi %13, %16 : vector<4x128xi32>
    %c0_i32 = arith.constant 0 : i32
    %18 = vector.broadcast %c0_i32 : i32 to vector<4x128xi32>
    %19 = arith.select %15, %17, %18 : vector<4x128xi1>, vector<4x128xi32>
    %20 = arith.sitofp %19 : vector<4x128xi32> to vector<4x128xf32>
    %21 = tpu.iota {dimensions = array<i32: 0>} : vector<128x32xi32>
    %22 = tpu.iota {dimensions = array<i32: 1>} : vector<128x32xi32>
    %c4_i32 = arith.constant 4 : i32
    %23 = vector.broadcast %c4_i32 : i32 to vector<128x32xi32>
    %24 = arith.muli %22, %23 : vector<128x32xi32>
    %25 = arith.cmpi eq, %21, %24 : vector<128x32xi32>
    %26 = arith.extui %25 : vector<128x32xi1> to vector<128x32xi32>
    %27 = arith.sitofp %26 : vector<128x32xi32> to vector<128x32xf32>
    %c4_i32_6 = arith.constant 4 : i32
    %28 = vector.broadcast %c4_i32_6 : i32 to vector<128x32xi32>
    %29 = arith.muli %22, %28 : vector<128x32xi32>
    %c3_i32_7 = arith.constant 3 : i32
    %30 = vector.broadcast %c3_i32_7 : i32 to vector<128x32xi32>
    %31 = arith.addi %29, %30 : vector<128x32xi32>
    %32 = arith.cmpi eq, %21, %31 : vector<128x32xi32>
    %33 = arith.extui %32 : vector<128x32xi1> to vector<128x32xi32>
    %34 = arith.sitofp %33 : vector<128x32xi32> to vector<128x32xf32>
    %cst = arith.constant dense<0.000000e+00> : vector<4x32xf32>
    %35 = tpu.matmul %20, %27, %cst {dimension_numbers = #tpu.dot_dimension_numbers<[1], [0], [0], [1], [0, 0, 1, 1], [], []>} : vector<4x128xf32>, vector<128x32xf32>, vector<4x32xf32> -> vector<4x32xf32>
    %cst_8 = arith.constant dense<0.000000e+00> : vector<4x32xf32>
    %36 = tpu.matmul %20, %34, %cst_8 {dimension_numbers = #tpu.dot_dimension_numbers<[1], [0], [0], [1], [0, 0, 1, 1], [], []>} : vector<4x128xf32>, vector<128x32xf32>, vector<4x32xf32> -> vector<4x32xf32>
    %37 = vector.extract_strided_slice %5 {offsets = [0, 0], sizes = [4, 1], strides = [1, 1]} : vector<4x128xi32> to vector<4x1xi32>
    %c1_i32 = arith.constant 1 : i32
    %38 = vector.broadcast %c1_i32 : i32 to vector<4x1xi32>
    %39 = arith.cmpi eq, %37, %38 : vector<4x1xi32>
    %40 = vector.shape_cast %39 : vector<4x1xi1> to vector<4x1xi1>
    %41 = vector.broadcast %40 : vector<4x1xi1> to vector<4x32xi1>
    %42 = arith.select %41, %35, %36 : vector<4x32xi1>, vector<4x32xf32>
    %43 = arith.fptosi %42 : vector<4x32xf32> to vector<4x32xi32>
    %c0_9 = arith.constant 0 : index
    %c0_10 = arith.constant 0 : index
    %c0_11 = arith.constant 0 : index
    %44 = vector.load %arg3[%c0_9, %c0_10, %c0_11] : memref<1x4x32xi32, #tpu.memory_space<vmem>>, vector<1x4x32xi32>
    %45 = vector.shape_cast %44 : vector<1x4x32xi32> to vector<4x32xi32>
    %46 = vector.shape_cast %43 : vector<4x32xi32> to vector<1x4x32xi32>
    tpu.vector_store %arg3[%c0_9, %c0_10, %c0_11], %46 {strides = array<i32>} : memref<1x4x32xi32, #tpu.memory_space<vmem>>, vector<1x4x32xi32>,
    return
  }
  func.func @transform_0(%arg0: i32) -> (i32, i32) {
    %c0_i32 = arith.constant 0 : i32
    %c0_i32_0 = arith.constant 0 : i32
    %c0_i32_1 = arith.constant 0 : i32
    return %c0_i32, %c0_i32_0 : i32, i32
  }
  func.func @transform_1(%arg0: i32) -> (i32, i32, i32) {
    %c0_i32 = arith.constant 0 : i32
    %c0_i32_0 = arith.constant 0 : i32
    %c0_i32_1 = arith.constant 0 : i32
    return %arg0, %c0_i32, %c0_i32_0 : i32, i32, i32
  }
  func.func @transform_2(%arg0: i32) -> (i32, i32, i32) {
    %c0_i32 = arith.constant 0 : i32
    %c0_i32_0 = arith.constant 0 : i32
    %c0_i32_1 = arith.constant 0 : i32
    return %arg0, %c0_i32, %c0_i32_0 : i32, i32, i32
  }
}

</mosaic_0001>

<llo_original>
// kernel: tpu_custom_call.1
$region0: #{tpu_custom_call.1}
  #allocation0 [shape = 'u32[]', space=smem, size = 0x4, offset = 0x4, fixed_abs, tag = 'smem constant byte address 0x4 - core index']
  #allocation1 [shape = 'u32[144,128]{1,0:T(1,128)}', space=vmem, size = 0x12000, scoped, tag = 'internal scratch']
  #allocation2 [shape = 'f32[1,1]{1,0:T(1,128)S(6)}', space=smem, size = 0x200, scoped, tag = 'scoped memory for tpu_custom_call.1']
  %s0 = inlined_call_operand.<no memory space> [shape: f32[1,1], index: 0, kind: input, shape index: {}]
  %s1 = inlined_call_operand.hbm [shape: f32[1,4,128], index: 1, kind: input, shape index: {}]
  %s2 = inlined_call_operand.hbm [shape: s32[1,4,32], index: 2, kind: output, shape index: {}]
  %s3 = sld [smem:[#allocation0]]
  $region22: #{tpu_custom_call.1} parent=0
    _
  %s5 = ssub.s32 1, %s3
  %s6 = scalar_select 0, %s5, %s3
  %7 = sst [smem:[#allocation2]] %s0
  $region1: #{tpu_custom_call.1} parent=0
    #allocation3 [shape = 'u8[2048]{0}', space=vmem, size = 0x800, scoped, tag = 'input window, operand 1, single buffered']
    #allocation4 [shape = 's32[1]{0}', space=sflag, size = 0x4, scoped, tag = 'scoped memory for tpu_custom_call.1']
    #allocation5 [shape = 's32[1]{0}', space=sflag, size = 0x4, scoped, tag = 'scoped memory for tpu_custom_call.1']
    #allocation6 [shape = 'u8[2048]{0}', space=vmem, size = 0x800, scoped, tag = 'output window, operand 0, single buffered']
    %8 = vsyncpa [#allocation4], 0
    %9 = vsyncpa [#allocation5], 0
    // Predicated region
    $region2: #{tpu_custom_call.1} parent=1 // pred_check
      _
    $region3: #{tpu_custom_call.1} parent=1 // pred_check_branch
      %11 = sbr.rel (0) target = $region5
    $region4: #{tpu_custom_call.1} parent=1 // pred_region
      _
    $region5: #{tpu_custom_call.1} parent=1 // pred_fallthru
      _
    // Predicated region
    $region6: #{tpu_custom_call.1} parent=1 // pred_check
      _
    $region7: #{tpu_custom_call.1} parent=1 // pred_check_branch
      %13 = sbr.rel (0) target = $region9
    $region8: #{tpu_custom_call.1} parent=1 // pred_region
      %s15 = ssub.s32 64, 64
      %16 = vsyncadd [#allocation4], %s15
      %s18 = sshll.u32 [#allocation3], 4
      %s19 = int_to_ptr.vmem [resolvable:$true] %s18
      %21 = dma.hbm_to_vmem [thread:$0]  %s1, 64, %s19, [#allocation4]
    $region9: #{tpu_custom_call.1} parent=1 // pred_fallthru
      _
    // Predicated region
    $region10: #{tpu_custom_call.1} parent=1 // pred_check
      _
    $region11: #{tpu_custom_call.1} parent=1 // pred_check_branch
      %23 = sbr.rel (0) target = $region13
    $region12: #{tpu_custom_call.1} parent=1 // pred_region
      %24 = dma.done [#allocation4], 64
    $region13: #{tpu_custom_call.1} parent=1 // pred_fallthru
      _
    %s25 = sld [smem:[#allocation2]]
    %v26 = vld [vmem:[#allocation3] sm:$0xf]
    %v27 = vlaneseq
    %v28 = vand.u32 %v27, 127
    %29 = vrot.lane.b32.xlu0 %v26, 127
    %v30 = vpop.permute.xlu0 %29
    %31 = vrot.lane.b32.xlu0 %v28, 127
    %v32 = vpop.permute.xlu0 %31
    %vm33 = vcmp.gt.f32.partialorder %v30, %v26
    %v34 = vsel %vm33, %v30, %v26
    %v35 = vsel %vm33, %v32, %v28
    %36 = vrot.lane.b32.xlu0 %v34, 126
    %v37 = vpop.permute.xlu0 %36
    %38 = vrot.lane.b32.xlu0 %v35, 126
    %v39 = vpop.permute.xlu0 %38
    %vm40 = vcmp.gt.f32.partialorder %v37, %v34
    %v41 = vsel %vm40, %v37, %v34
    %v42 = vsel %vm40, %v39, %v35
    %v43 = vstv %s25
    %vm44 = vcmp.ge.f32.partialorder %v41, %v43
    %v45 = vand.u32 %v42, 3
    %v46 = vsel %vm44, %v45, 0
    %v47 = vcvt.s32.f32 %v46
    %v48 = vlaneseq
    %v49 = vshrl.u32 %v48, 7
    %v50 = vadd.s32 %v49, 8
    %v51 = vadd.s32 %v49, 16
    %v52 = vadd.s32 %v49, 24
    %v53 = vadd.s32 %v49, 32
    %v54 = vadd.s32 %v49, 40
    %v55 = vadd.s32 %v49, 48
    %v56 = vadd.s32 %v49, 56
    %v57 = vadd.s32 %v49, 64
    %v58 = vadd.s32 %v49, 72
    %v59 = vadd.s32 %v49, 80
    %v60 = vadd.s32 %v49, 88
    %v61 = vadd.s32 %v49, 96
    %v62 = vadd.s32 %v49, 104
    %v63 = vadd.s32 %v49, 112
    %v64 = vadd.s32 %v49, 120
    %v65 = vmul.u32 %v28, 4
    %vm66 = vcmp.eq.s32.totalorder %v49, %v65
    %vm67 = vcmp.eq.s32.totalorder %v50, %v65
    %vm68 = vcmp.eq.s32.totalorder %v51, %v65
    %vm69 = vcmp.eq.s32.totalorder %v52, %v65
    %vm70 = vcmp.eq.s32.totalorder %v53, %v65
    %vm71 = vcmp.eq.s32.totalorder %v54, %v65
    %vm72 = vcmp.eq.s32.totalorder %v55, %v65
    %vm73 = vcmp.eq.s32.totalorder %v56, %v65
    %vm74 = vcmp.eq.s32.totalorder %v57, %v65
    %vm75 = vcmp.eq.s32.totalorder %v58, %v65
    %vm76 = vcmp.eq.s32.totalorder %v59, %v65
    %vm77 = vcmp.eq.s32.totalorder %v60, %v65
    %vm78 = vcmp.eq.s32.totalorder %v61, %v65
    %vm79 = vcmp.eq.s32.totalorder %v62, %v65
    %vm80 = vcmp.eq.s32.totalorder %v63, %v65
    %vm81 = vcmp.eq.s32.totalorder %v64, %v65
    %v82 = vsel %vm66, 1, 0
    %v83 = vsel %vm67, 1, 0
    %v84 = vsel %vm68, 1, 0
    %v85 = vsel %vm69, 1, 0
    %v86 = vsel %vm70, 1, 0
    %v87 = vsel %vm71, 1, 0
    %v88 = vsel %vm72, 1, 0
    %v89 = vsel %vm73, 1, 0
    %v90 = vsel %vm74, 1, 0
    %v91 = vsel %vm75, 1, 0
    %v92 = vsel %vm76, 1, 0
    %v93 = vsel %vm77, 1, 0
    %v94 = vsel %vm78, 1, 0
    %v95 = vsel %vm79, 1, 0
    %v96 = vsel %vm80, 1, 0
    %v97 = vsel %vm81, 1, 0
    %v98 = vcvt.s32.f32 %v82
    %v99 = vcvt.s32.f32 %v83
    %v100 = vcvt.s32.f32 %v84
    %v101 = vcvt.s32.f32 %v85
    %v102 = vcvt.s32.f32 %v86
    %v103 = vcvt.s32.f32 %v87
    %v104 = vcvt.s32.f32 %v88
    %v105 = vcvt.s32.f32 %v89
    %v106 = vcvt.s32.f32 %v90
    %v107 = vcvt.s32.f32 %v91
    %v108 = vcvt.s32.f32 %v92
    %v109 = vcvt.s32.f32 %v93
    %v110 = vcvt.s32.f32 %v94
    %v111 = vcvt.s32.f32 %v95
    %v112 = vcvt.s32.f32 %v96
    %v113 = vcvt.s32.f32 %v97
    %v114 = vadd.s32 %v65, 3
    %vm115 = vcmp.eq.s32.totalorder %v49, %v114
    %vm116 = vcmp.eq.s32.totalorder %v50, %v114
    %vm117 = vcmp.eq.s32.totalorder %v51, %v114
    %vm118 = vcmp.eq.s32.totalorder %v52, %v114
    %vm119 = vcmp.eq.s32.totalorder %v53, %v114
    %vm120 = vcmp.eq.s32.totalorder %v54, %v114
    %vm121 = vcmp.eq.s32.totalorder %v55, %v114
    %vm122 = vcmp.eq.s32.totalorder %v56, %v114
    %vm123 = vcmp.eq.s32.totalorder %v57, %v114
    %vm124 = vcmp.eq.s32.totalorder %v58, %v114
    %vm125 = vcmp.eq.s32.totalorder %v59, %v114
    %vm126 = vcmp.eq.s32.totalorder %v60, %v114
    %vm127 = vcmp.eq.s32.totalorder %v61, %v114
    %vm128 = vcmp.eq.s32.totalorder %v62, %v114
    %vm129 = vcmp.eq.s32.totalorder %v63, %v114
    %vm130 = vcmp.eq.s32.totalorder %v64, %v114
    %v131 = vsel %vm115, 1, 0
    %v132 = vsel %vm116, 1, 0
    %v133 = vsel %vm117, 1, 0
    %v134 = vsel %vm118, 1, 0
    %v135 = vsel %vm119, 1, 0
    %v136 = vsel %vm120, 1, 0
    %v137 = vsel %vm121, 1, 0
    %v138 = vsel %vm122, 1, 0
    %v139 = vsel %vm123, 1, 0
    %v140 = vsel %vm124, 1, 0
    %v141 = vsel %vm125, 1, 0
    %v142 = vsel %vm126, 1, 0
    %v143 = vsel %vm127, 1, 0
    %v144 = vsel %vm128, 1, 0
    %v145 = vsel %vm129, 1, 0
    %v146 = vsel %vm130, 1, 0
    %v147 = vcvt.s32.f32 %v131
    %v148 = vcvt.s32.f32 %v132
    %v149 = vcvt.s32.f32 %v133
    %v150 = vcvt.s32.f32 %v134
    %v151 = vcvt.s32.f32 %v135
    %v152 = vcvt.s32.f32 %v136
    %v153 = vcvt.s32.f32 %v137
    %v154 = vcvt.s32.f32 %v138
    %v155 = vcvt.s32.f32 %v139
    %v156 = vcvt.s32.f32 %v140
    %v157 = vcvt.s32.f32 %v141
    %v158 = vcvt.s32.f32 %v142
    %v159 = vcvt.s32.f32 %v143
    %v160 = vcvt.s32.f32 %v144
    %v161 = vcvt.s32.f32 %v145
    %v162 = vcvt.s32.f32 %v146
    %163 = vmatprep.subr.mxu0 0.0
    %164 = vmatpush1.msra.mxu0 %v98
    %165 = vmatprep.subr.mxu0 0.0
    %166 = vmatpush1.msra.mxu0 %v99
    %167 = vmatprep.subr.mxu0 0.0
    %168 = vmatpush1.msra.mxu0 %v100
    %169 = vmatprep.subr.mxu0 0.0
    %170 = vmatpush1.msra.mxu0 %v101
    %171 = vmatprep.subr.mxu0 0.0
    %172 = vmatpush1.msra.mxu0 %v102
    %173 = vmatprep.subr.mxu0 0.0
    %174 = vmatpush1.msra.mxu0 %v103
    %175 = vmatprep.subr.mxu0 0.0
    %176 = vmatpush1.msra.mxu0 %v104
    %177 = vmatprep.subr.mxu0 0.0
    %178 = vmatpush1.msra.mxu0 %v105
    %179 = vmatprep.subr.mxu0 0.0
    %180 = vmatpush1.msra.mxu0 %v106
    %181 = vmatprep.subr.mxu0 0.0
    %182 = vmatpush1.msra.mxu0 %v107
    %183 = vmatprep.subr.mxu0 0.0
    %184 = vmatpush1.msra.mxu0 %v108
    %185 = vmatprep.subr.mxu0 0.0
    %186 = vmatpush1.msra.mxu0 %v109
    %187 = vmatprep.subr.mxu0 0.0
    %188 = vmatpush1.msra.mxu0 %v110
    %189 = vmatprep.subr.mxu0 0.0
    %190 = vmatpush1.msra.mxu0 %v111
    %191 = vmatprep.subr.mxu0 0.0
    %192 = vmatpush1.msra.mxu0 %v112
    %193 = vmatprep.subr.mxu0 0.0
    %194 = vmatpush1.msra.mxu0 %v113
    %195 = vmatprep.subr.mxu0 0.0
    %196 = vmatpush1.msra.mxu0 0.0
    %197 = vmatprep.subr.mxu0 0.0
    %198 = vmatpush1.msra.mxu0 0.0
    %199 = vmatprep.subr.mxu0 0.0
    %200 = vmatpush1.msra.mxu0 0.0
    %201 = vmatprep.subr.mxu0 0.0
    %202 = vmatpush1.msra.mxu0 0.0
    %203 = vmatprep.subr.mxu0 0.0
    %204 = vmatpush1.msra.mxu0 0.0
    %205 = vmatprep.subr.mxu0 0.0
    %206 = vmatpush1.msra.mxu0 0.0
    %207 = vmatprep.subr.mxu0 0.0
    %208 = vmatpush1.msra.mxu0 0.0
    %209 = vmatprep.subr.mxu0 0.0
    %210 = vmatpush1.msra.mxu0 0.0
    %211 = vmatprep.subr.mxu0 0.0
    %212 = vmatpush1.msra.mxu0 0.0
    %213 = vmatprep.subr.mxu0 0.0
    %214 = vmatpush1.msra.mxu0 0.0
    %215 = vmatprep.subr.mxu0 0.0
    %216 = vmatpush1.msra.mxu0 0.0
    %217 = vmatprep.subr.mxu0 0.0
    %218 = vmatpush1.msra.mxu0 0.0
    %219 = vmatprep.subr.mxu0 0.0
    %220 = vmatpush1.msra.mxu0 0.0
    %221 = vmatprep.subr.mxu0 0.0
    %222 = vmatpush1.msra.mxu0 0.0
    %223 = vmatprep.subr.mxu0 0.0
    %224 = vmatpush1.msra.mxu0 0.0
    %225 = vmatprep.subr.mxu0 0.0
    %226 = vmatpush1.msra.mxu0 0.0
    %227 = vmatprep.mubr.f32.mxu0 0.0
    %228 = vmatmul.mubr.f32.gmra.mrb[0].mxu0 %v47
    %v229 = vpop.f32.mrb[0].mxu0
    %v230 = vadd.f32 0.0, %v229
    %v231 = vpop.f32.mrb[0].mxu0
    %232 = vdwg.mxu0
    %233 = vmatprep.subr.mxu0 0.0
    %234 = vmatpush1.msra.mxu0 %v147
    %235 = vmatprep.subr.mxu0 0.0
    %236 = vmatpush1.msra.mxu0 %v148
    %237 = vmatprep.subr.mxu0 0.0
    %238 = vmatpush1.msra.mxu0 %v149
    %239 = vmatprep.subr.mxu0 0.0
    %240 = vmatpush1.msra.mxu0 %v150
    %241 = vmatprep.subr.mxu0 0.0
    %242 = vmatpush1.msra.mxu0 %v151
    %243 = vmatprep.subr.mxu0 0.0
    %244 = vmatpush1.msra.mxu0 %v152
    %245 = vmatprep.subr.mxu0 0.0
    %246 = vmatpush1.msra.mxu0 %v153
    %247 = vmatprep.subr.mxu0 0.0
    %248 = vmatpush1.msra.mxu0 %v154
    %249 = vmatprep.subr.mxu0 0.0
    %250 = vmatpush1.msra.mxu0 %v155
    %251 = vmatprep.subr.mxu0 0.0
    %252 = vmatpush1.msra.mxu0 %v156
    %253 = vmatprep.subr.mxu0 0.0
    %254 = vmatpush1.msra.mxu0 %v157
    %255 = vmatprep.subr.mxu0 0.0
    %256 = vmatpush1.msra.mxu0 %v158
    %257 = vmatprep.subr.mxu0 0.0
    %258 = vmatpush1.msra.mxu0 %v159
    %259 = vmatprep.subr.mxu0 0.0
    %260 = vmatpush1.msra.mxu0 %v160
    %261 = vmatprep.subr.mxu0 0.0
    %262 = vmatpush1.msra.mxu0 %v161
    %263 = vmatprep.subr.mxu0 0.0
    %264 = vmatpush1.msra.mxu0 %v162
    %265 = vmatprep.subr.mxu0 0.0
    %266 = vmatpush1.msra.mxu0 0.0
    %267 = vmatprep.subr.mxu0 0.0
    %268 = vmatpush1.msra.mxu0 0.0
    %269 = vmatprep.subr.mxu0 0.0
    %270 = vmatpush1.msra.mxu0 0.0
    %271 = vmatprep.subr.mxu0 0.0
    %272 = vmatpush1.msra.mxu0 0.0
    %273 = vmatprep.subr.mxu0 0.0
    %274 = vmatpush1.msra.mxu0 0.0
    %275 = vmatprep.subr.mxu0 0.0
    %276 = vmatpush1.msra.mxu0 0.0
    %277 = vmatprep.subr.mxu0 0.0
    %278 = vmatpush1.msra.mxu0 0.0
    %279 = vmatprep.subr.mxu0 0.0
    %280 = vmatpush1.msra.mxu0 0.0
    %281 = vmatprep.subr.mxu0 0.0
    %282 = vmatpush1.msra.mxu0 0.0
    %283 = vmatprep.subr.mxu0 0.0
    %284 = vmatpush1.msra.mxu0 0.0
    %285 = vmatprep.subr.mxu0 0.0
    %286 = vmatpush1.msra.mxu0 0.0
    %287 = vmatprep.subr.mxu0 0.0
    %288 = vmatpush1.msra.mxu0 0.0
    %289 = vmatprep.subr.mxu0 0.0
    %290 = vmatpush1.msra.mxu0 0.0
    %291 = vmatprep.subr.mxu0 0.0
    %292 = vmatpush1.msra.mxu0 0.0
    %293 = vmatprep.subr.mxu0 0.0
    %294 = vmatpush1.msra.mxu0 0.0
    %295 = vmatprep.subr.mxu0 0.0
    %296 = vmatpush1.msra.mxu0 0.0
    %297 = vmatprep.mubr.f32.mxu0 0.0
    %298 = vmatmul.mubr.f32.gmra.mrb[0].mxu0 %v47
    %v299 = vpop.f32.mrb[0].mxu0
    %v300 = vadd.f32 0.0, %v299
    %v301 = vpop.f32.mrb[0].mxu0
    %302 = vdwg.mxu0
    %vm303 = vcmp.eq.s32.totalorder %v32, 1
    %v304 = vsel %vm303, 1, 0
    %305 = vset.pattern.permute.xlu0 0
    %306 = vperm.xlu0 %305, %v304
    %v307 = vpop.permute.xlu0 %306
    %vm308 = vcmp.eq.s32.totalorder %v307, 1
    %v309 = vsel %vm308, %v230, %v300
    %v310 = vcvt.f32.s32.to.zero.pseudo %v309
    %vm311 = vcmask 257024
    %312 = vst.msk [vmem:[#allocation6] sm:$0xf] %vm311, %v310
    // Predicated region
    $region14: #{tpu_custom_call.1} parent=1 // pred_check
      _
    $region15: #{tpu_custom_call.1} parent=1 // pred_check_branch
      %314 = sbr.rel (0) target = $region17
    $region16: #{tpu_custom_call.1} parent=1 // pred_region
      %s316 = ssub.s32 64, 64
      %317 = vsyncadd [#allocation5], %s316
      %s319 = sshll.u32 [#allocation6], 4
      %s320 = int_to_ptr.vmem [resolvable:$true] %s319
      %322 = dma.vmem_to_hbm [thread:$0]  %s320, 64, %s2, [#allocation5]
    $region17: #{tpu_custom_call.1} parent=1 // pred_fallthru
      _
    // Predicated region
    $region18: #{tpu_custom_call.1} parent=1 // pred_check
      _
    $region19: #{tpu_custom_call.1} parent=1 // pred_check_branch
      %324 = sbr.rel (0) target = $region21
    $region20: #{tpu_custom_call.1} parent=1 // pred_region
      %325 = dma.done [#allocation5], 64
    $region21: #{tpu_custom_call.1} parent=1 // pred_fallthru
      _
    %326 = vsyncpa [#allocation4], 1
    %327 = vsyncpa [#allocation5], 1

</llo_original>
